<compile_context>
chip_gen: v7x
topology: tpu7x:2x2x1
jax: 0.10.0
libtpu: 0.0.40
codegen_flags: <defaults>
</compile_context>

<pallas_src>
import functools

import jax
import jax.numpy as jnp
from jax.experimental import pallas as pl
from jax.experimental.pallas import tpu as pltpu

SUBLANE = 8
MAX_BATCH_TILE = 2048


def _round_up(x: int, m: int) -> int:
    return (x + m - 1) // m * m


def actor_kernel(x_ref, w1_ref, b1_ref, w2_ref, b2_ref, w3_ref, b3_ref, mean_ref):
    # State streamed in f32, cast to compute dtype in-kernel (saves a wrapper pass).
    x = x_ref[...].astype(w1_ref.dtype)
    # Layer 1: Linear + ReLU (MXU in compute dtype, f32 accumulate, f32 elementwise)
    h1 = jnp.dot(x, w1_ref[...], preferred_element_type=jnp.float32)
    h1 = jnp.maximum(h1 + b1_ref[...], 0.0)
    # Layer 2: Linear + ReLU
    h2 = jnp.dot(h1.astype(w2_ref.dtype), w2_ref[...],
                 preferred_element_type=jnp.float32)
    h2 = jnp.maximum(h2 + b2_ref[...], 0.0)
    # Layer 3: Linear + Tanh -> action mean
    m = jnp.dot(h2.astype(w3_ref.dtype), w3_ref[...],
                preferred_element_type=jnp.float32)
    mean_ref[...] = jnp.tanh(m + b3_ref[...]).astype(mean_ref.dtype)


def prepare_params(params, compute_dtype=jnp.bfloat16):
    """One-time (outside the per-step path) cast of the matmul weights to the
    compute dtype.  Biases and log_std stay f32."""
    w1, b1, w2, b2, w3, b3, log_std = params
    return (w1.astype(compute_dtype), b1,
            w2.astype(compute_dtype), b2,
            w3.astype(compute_dtype), b3,
            log_std)


def actor_forward(state, kernel_params, *, min_tiles=1):
    """Returns (action_mean [B, A], cov_mat [A, A]) matching the torch module.

    `kernel_params` should come from prepare_params().  On v7x pass
    min_tiles=2 so the parallel batch axis feeds both TensorCores; keep the
    default (1) on single-TC v5e/v6e.
    """
    w1, b1, w2, b2, w3, b3, log_std = kernel_params
    B, S = state.shape
    H = w1.shape[1]
    A = w3.shape[1]

    # --- batch tiling -------------------------------------------------------
    # Pad only to a multiple of SUBLANE; pick TB adaptively so per-tile padding
    # never exceeds ~SUBLANE rows, and tile count respects min_tiles parity.
    B8 = _round_up(B, SUBLANE)
    n_tiles = max(pl.cdiv(B8, MAX_BATCH_TILE), 1)
    if min_tiles > 1:
        n_tiles = _round_up(max(n_tiles, min_tiles), min_tiles)
    TB = _round_up(pl.cdiv(B8, n_tiles), SUBLANE)
    B_pad = n_tiles * TB

    x = state  # streamed f32; cast happens inside the kernel
    if B_pad != B:
        x = jnp.pad(x, ((0, B_pad - B), (0, 0)))

    itemw = jnp.dtype(w1.dtype).itemsize
    cost = pl.CostEstimate(
        flops=2 * B_pad * (S * H + H * H + H * A),
        transcendentals=B_pad * A,
        bytes_accessed=(x.size * jnp.dtype(x.dtype).itemsize
                        + (w1.size + w2.size + w3.size) * itemw
                        + (b1.size + b2.size + b3.size) * 4
                        + B_pad * A * 4),
    )

    # Constant index_map => weights/biases DMA'd once and stay VMEM-resident;
    # Buffered(1): no double buffer needed for constant blocks.
    def const(shape):
        return pl.BlockSpec(shape, lambda i: (0, 0),
                            pipeline_mode=pl.Buffered(buffer_count=1))

    mean_full = pl.pallas_call(
        actor_kernel,
        out_shape=jax.ShapeDtypeStruct((B_pad, A), jnp.float32),
        grid=(n_tiles,),
        in_specs=[
            pl.BlockSpec((TB, S), lambda i: (i, 0)),   # state tile (streamed, f32)
            const((S, H)),                             # W1^T (VMEM-resident)
            const((1, H)),                             # b1
            const((H, H)),                             # W2^T
            const((1, H)),                             # b2
            const((H, A)),                             # W3^T
            const((1, A)),                             # b3
        ],
        out_specs=pl.BlockSpec((TB, A), lambda i: (i, 0)),
        compiler_params=pltpu.CompilerParams(
            dimension_semantics=("parallel",)),        # megacore sharding on v7x
        cost_estimate=cost,
    )(x, w1, b1, w2, b2, w3, b3)

    mean = mean_full if B_pad == B else mean_full[:B]

    # Covariance is state-independent: computed once in the wrapper, O(A) work.
    action_std = jnp.exp(log_std)
    cov_mat = jnp.diag(action_std * action_std)
    # TODO(synk): torch.distributions.MultivariateNormal object has no Pallas
    # equivalent; we return its parameters (mean, dense diag covariance).
    return mean, cov_mat


def init_params(key, state_dim, action_dim, hidden_dim):
    ks = jax.random.split(key, 6)
    scale = 0.1
    # Stored pre-transposed: (in_features, out_features), f32 master copies.
    w1 = scale * jax.random.normal(ks[0], (state_dim, hidden_dim), jnp.float32)
    b1 = scale * jax.random.normal(ks[1], (1, hidden_dim), jnp.float32)
    w2 = scale * jax.random.normal(ks[2], (hidden_dim, hidden_dim), jnp.float32)
    b2 = scale * jax.random.normal(ks[3], (1, hidden_dim), jnp.float32)
    w3 = scale * jax.random.normal(ks[4], (hidden_dim, action_dim), jnp.float32)
    b3 = scale * jax.random.normal(ks[5], (1, action_dim), jnp.float32)
    log_std = jnp.zeros((action_dim,), jnp.float32)  # nn.Parameter(torch.zeros(action_dim))
    return (w1, b1, w2, b2, w3, b3, log_std)


def reference_forward(state, params, compute_dtype=jnp.float32):
    """Pure-JAX reference applying the same dtype policy as the kernel."""
    w1, b1, w2, b2, w3, b3, log_std = params
    cd = compute_dtype
    x = state.astype(cd)
    h1 = jnp.maximum(
        jnp.dot(x, w1.astype(cd), preferred_element_type=jnp.float32) + b1, 0.0)
    h2 = jnp.maximum(
        jnp.dot(h1.astype(cd), w2.astype(cd), preferred_element_type=jnp.float32) + b2, 0.0)
    mean = jnp.tanh(
        jnp.dot(h2.astype(cd), w3.astype(cd), preferred_element_type=jnp.float32) + b3)
    cov = jnp.diag(jnp.exp(log_std) ** 2)
    return mean, cov


if __name__ == "__main__":
    # Small shapes consistent with the module's forward.
    batch, state_dim, action_dim, hidden_dim = 8, 16, 8, 32

    key = jax.random.PRNGKey(0)
    k_state, k_big, k_params = jax.random.split(key, 3)
    state = jax.random.normal(k_state, (batch, state_dim), jnp.float32)
    params = init_params(k_params, state_dim, action_dim, hidden_dim)

    # --- exactness check: f32 compute path, single tile -----------------------
    params_f32 = prepare_params(params, jnp.float32)   # one-time prep, outside jit
    fwd = jax.jit(actor_forward)
    mean, cov_mat = fwd(state, params_f32)
    jax.block_until_ready((mean, cov_mat))
    ref_mean, ref_cov = reference_forward(state, params, jnp.float32)
    assert mean.shape == (batch, action_dim)
    assert cov_mat.shape == (action_dim, action_dim)
    assert jnp.allclose(mean, ref_mean, atol=1e-5), "f32 mean mismatch"
    assert jnp.allclose(cov_mat, ref_cov, atol=1e-5), "covariance mismatch"

    # --- default bf16 weights, multi-tile batch (exercises grid + tail pad) ---
    big_batch = 4100   # -> 3 tiles of 1368 rows, 4 rows of padding
    big_state = jax.random.normal(k_big, (big_batch, state_dim), jnp.float32)
    params_bf16 = prepare_params(params, jnp.bfloat16)  # one-time prep
    mean_b, cov_b = fwd(big_state, params_bf16)
    jax.block_until_ready((mean_b, cov_b))
    ref_mean_b, _ = reference_forward(big_state, params, jnp.bfloat16)
    assert mean_b.shape == (big_batch, action_dim)
    assert jnp.allclose(mean_b, ref_mean_b, atol=2e-3), "bf16 mean mismatch"
    assert jnp.allclose(cov_b, ref_cov, atol=1e-5), "covariance mismatch (bf16 path)"

    print("KERNEL_OK")
</pallas_src>

<mosaic_0001>
module attributes {stable_mosaic.version = 11 : i64} {
  func.func @actor_kernel(%arg0: i32, %arg1: memref<8x16xf32, #tpu.memory_space<vmem>>, %arg2: memref<16x32xf32, #tpu.memory_space<vmem>>, %arg3: memref<1x32xf32, #tpu.memory_space<vmem>>, %arg4: memref<32x32xf32, #tpu.memory_space<vmem>>, %arg5: memref<1x32xf32, #tpu.memory_space<vmem>>, %arg6: memref<32x8xf32, #tpu.memory_space<vmem>>, %arg7: memref<1x8xf32, #tpu.memory_space<vmem>>, %arg8: memref<8x8xf32, #tpu.memory_space<vmem>>) attributes {dimension_semantics = [#tpu.dimension_semantics<parallel>], iteration_bounds = array<i64: 1>, scalar_prefetch = 0 : i64, scratch_operands = 0 : i64, tpu.core_type = #tpu.core_type<tc>, window_params = [{transform_indices = @transform_0, window_bounds = array<i64: 8, 16>}, {pipeline_mode = #tpu.pipeline_mode<synchronous>, transform_indices = @transform_1, window_bounds = array<i64: 16, 32>}, {pipeline_mode = #tpu.pipeline_mode<synchronous>, transform_indices = @transform_2, window_bounds = array<i64: 1, 32>}, {pipeline_mode = #tpu.pipeline_mode<synchronous>, transform_indices = @transform_3, window_bounds = array<i64: 32, 32>}, {pipeline_mode = #tpu.pipeline_mode<synchronous>, transform_indices = @transform_4, window_bounds = array<i64: 1, 32>}, {pipeline_mode = #tpu.pipeline_mode<synchronous>, transform_indices = @transform_5, window_bounds = array<i64: 32, 8>}, {pipeline_mode = #tpu.pipeline_mode<synchronous>, transform_indices = @transform_6, window_bounds = array<i64: 1, 8>}, {transform_indices = @transform_7, window_bounds = array<i64: 8, 8>}]} {
    %c0 = arith.constant 0 : index
    %c0_0 = arith.constant 0 : index
    %0 = vector.load %arg1[%c0, %c0_0] : memref<8x16xf32, #tpu.memory_space<vmem>>, vector<8x16xf32>
    %c0_1 = arith.constant 0 : index
    %c0_2 = arith.constant 0 : index
    %1 = vector.load %arg2[%c0_1, %c0_2] : memref<16x32xf32, #tpu.memory_space<vmem>>, vector<16x32xf32>
    %cst = arith.constant dense<0.000000e+00> : vector<8x32xf32>
    %2 = tpu.matmul %0, %1, %cst {dimension_numbers = #tpu.dot_dimension_numbers<[1], [0], [0], [1], [0, 0, 1, 1], [], []>} : vector<8x16xf32>, vector<16x32xf32>, vector<8x32xf32> -> vector<8x32xf32>
    %c0_3 = arith.constant 0 : index
    %c0_4 = arith.constant 0 : index
    %3 = vector.load %arg3[%c0_3, %c0_4] : memref<1x32xf32, #tpu.memory_space<vmem>>, vector<1x32xf32>
    %4 = vector.broadcast %3 : vector<1x32xf32> to vector<8x32xf32>
    %5 = arith.addf %2, %4 : vector<8x32xf32>
    %cst_5 = arith.constant 0.000000e+00 : f32
    %6 = vector.broadcast %cst_5 : f32 to vector<8x32xf32>
    %7 = arith.maximumf %5, %6 : vector<8x32xf32>
    %c0_6 = arith.constant 0 : index
    %c0_7 = arith.constant 0 : index
    %8 = vector.load %arg4[%c0_6, %c0_7] : memref<32x32xf32, #tpu.memory_space<vmem>>, vector<32x32xf32>
    %cst_8 = arith.constant dense<0.000000e+00> : vector<8x32xf32>
    %9 = tpu.matmul %7, %8, %cst_8 {dimension_numbers = #tpu.dot_dimension_numbers<[1], [0], [0], [1], [0, 0, 1, 1], [], []>} : vector<8x32xf32>, vector<32x32xf32>, vector<8x32xf32> -> vector<8x32xf32>
    %c0_9 = arith.constant 0 : index
    %c0_10 = arith.constant 0 : index
    %10 = vector.load %arg5[%c0_9, %c0_10] : memref<1x32xf32, #tpu.memory_space<vmem>>, vector<1x32xf32>
    %11 = vector.broadcast %10 : vector<1x32xf32> to vector<8x32xf32>
    %12 = arith.addf %9, %11 : vector<8x32xf32>
    %cst_11 = arith.constant 0.000000e+00 : f32
    %13 = vector.broadcast %cst_11 : f32 to vector<8x32xf32>
    %14 = arith.maximumf %12, %13 : vector<8x32xf32>
    %c0_12 = arith.constant 0 : index
    %c0_13 = arith.constant 0 : index
    %15 = vector.load %arg6[%c0_12, %c0_13] : memref<32x8xf32, #tpu.memory_space<vmem>>, vector<32x8xf32>
    %cst_14 = arith.constant dense<0.000000e+00> : vector<8x8xf32>
    %16 = tpu.matmul %14, %15, %cst_14 {dimension_numbers = #tpu.dot_dimension_numbers<[1], [0], [0], [1], [0, 0, 1, 1], [], []>} : vector<8x32xf32>, vector<32x8xf32>, vector<8x8xf32> -> vector<8x8xf32>
    %c0_15 = arith.constant 0 : index
    %c0_16 = arith.constant 0 : index
    %17 = vector.load %arg7[%c0_15, %c0_16] : memref<1x8xf32, #tpu.memory_space<vmem>>, vector<1x8xf32>
    %18 = vector.broadcast %17 : vector<1x8xf32> to vector<8x8xf32>
    %19 = arith.addf %16, %18 : vector<8x8xf32>
    %20 = math.tanh %19 : vector<8x8xf32>
    %c0_17 = arith.constant 0 : index
    %c0_18 = arith.constant 0 : index
    %21 = vector.load %arg8[%c0_17, %c0_18] : memref<8x8xf32, #tpu.memory_space<vmem>>, vector<8x8xf32>
    tpu.vector_store %arg8[%c0_17, %c0_18], %20 {strides = array<i32>} : memref<8x8xf32, #tpu.memory_space<vmem>>, vector<8x8xf32>,
    return
  }
  func.func @transform_0(%arg0: i32) -> (i32, i32) {
    %c0_i32 = arith.constant 0 : i32
    %c0_i32_0 = arith.constant 0 : i32
    return %arg0, %c0_i32 : i32, i32
  }
  func.func @transform_1(%arg0: i32) -> (i32, i32) {
    %c0_i32 = arith.constant 0 : i32
    %c0_i32_0 = arith.constant 0 : i32
    %c0_i32_1 = arith.constant 0 : i32
    return %c0_i32, %c0_i32_0 : i32, i32
  }
  func.func @transform_2(%arg0: i32) -> (i32, i32) {
    %c0_i32 = arith.constant 0 : i32
    %c0_i32_0 = arith.constant 0 : i32
    %c0_i32_1 = arith.constant 0 : i32
    return %c0_i32, %c0_i32_0 : i32, i32
  }
  func.func @transform_3(%arg0: i32) -> (i32, i32) {
    %c0_i32 = arith.constant 0 : i32
    %c0_i32_0 = arith.constant 0 : i32
    %c0_i32_1 = arith.constant 0 : i32
    return %c0_i32, %c0_i32_0 : i32, i32
  }
  func.func @transform_4(%arg0: i32) -> (i32, i32) {
    %c0_i32 = arith.constant 0 : i32
    %c0_i32_0 = arith.constant 0 : i32
    %c0_i32_1 = arith.constant 0 : i32
    return %c0_i32, %c0_i32_0 : i32, i32
  }
  func.func @transform_5(%arg0: i32) -> (i32, i32) {
    %c0_i32 = arith.constant 0 : i32
    %c0_i32_0 = arith.constant 0 : i32
    %c0_i32_1 = arith.constant 0 : i32
    return %c0_i32, %c0_i32_0 : i32, i32
  }
  func.func @transform_6(%arg0: i32) -> (i32, i32) {
    %c0_i32 = arith.constant 0 : i32
    %c0_i32_0 = arith.constant 0 : i32
    %c0_i32_1 = arith.constant 0 : i32
    return %c0_i32, %c0_i32_0 : i32, i32
  }
  func.func @transform_7(%arg0: i32) -> (i32, i32) {
    %c0_i32 = arith.constant 0 : i32
    %c0_i32_0 = arith.constant 0 : i32
    return %arg0, %c0_i32 : i32, i32
  }
}

</mosaic_0001>

<llo_original>
// kernel: actor_forward.1
$region0: #{actor_forward.1}
  #allocation0 [shape = 'u32[]', space=smem, size = 0x4, offset = 0x4, fixed_abs, tag = 'smem constant byte address 0x4 - core index']
  #allocation1 [shape = 'u32[144,128]{1,0:T(1,128)}', space=vmem, size = 0x12000, scoped, tag = 'internal scratch']
  %s0 = inlined_call_operand.hbm [shape: f32[8,16], index: 0, kind: input, shape index: {}]
  %s1 = inlined_call_operand.vmem [shape: f32[16,32], index: 1, kind: input, shape index: {}]
  %s2 = inlined_call_operand.vmem [shape: f32[1,32], index: 2, kind: input, shape index: {}]
  %s3 = inlined_call_operand.vmem [shape: f32[32,32], index: 3, kind: input, shape index: {}]
  %s4 = inlined_call_operand.vmem [shape: f32[1,32], index: 4, kind: input, shape index: {}]
  %s5 = inlined_call_operand.vmem [shape: f32[32,8], index: 5, kind: input, shape index: {}]
  %s6 = inlined_call_operand.hbm [shape: f32[1,8], index: 6, kind: input, shape index: {}]
  %s7 = inlined_call_operand.hbm [shape: f32[8,8], index: 7, kind: output, shape index: {}]
  %s8 = sld [smem:[#allocation0]]
  $region46: #{actor_forward.1} parent=0
    _
  %s10 = ssub.s32 1, %s8
  %s11 = scalar_select 0, %s10, %s8
  $region1: #{actor_forward.1} parent=0
    #allocation2 [shape = 'u8[4096]{0}', space=vmem, size = 0x1000, scoped, tag = 'input window, operand 0, single buffered']
    #allocation3 [shape = 's32[1]{0}', space=sflag, size = 0x4, scoped, tag = 'scoped memory for actor_forward.1']
    #allocation4 [shape = 's32[1]{0}', space=sflag, size = 0x4, scoped, tag = 'scoped memory for actor_forward.1']
    #allocation5 [shape = 'u8[512]{0}', space=vmem, size = 0x400, scoped, tag = 'input window, operand 6, single buffered']
    #allocation6 [shape = 's32[1]{0}', space=sflag, size = 0x4, scoped, tag = 'scoped memory for actor_forward.1']
    #allocation7 [shape = 'u8[4096]{0}', space=vmem, size = 0x1000, scoped, tag = 'output window, operand 0, single buffered']
    %12 = vsyncpa [#allocation3], 0
    %13 = vsyncpa [#allocation6], 0
    %14 = vsyncpa [#allocation4], 0
    // Predicated region
    $region2: #{actor_forward.1} parent=1 // pred_check
      _
    $region3: #{actor_forward.1} parent=1 // pred_check_branch
      %16 = sbr.rel (0) target = $region5
    $region4: #{actor_forward.1} parent=1 // pred_region
      %s18 = ssub.s32 128, 128
      %19 = vsyncadd [#allocation3], %s18
      %s21 = sshll.u32 [#allocation2], 4
      %s22 = int_to_ptr.vmem [resolvable:$true] %s21
      %24 = dma.hbm_to_vmem [thread:$0]  %s0, 128, %s22, [#allocation3]
    $region5: #{actor_forward.1} parent=1 // pred_fallthru
      _
    // Predicated region
    $region6: #{actor_forward.1} parent=1 // pred_check
      _
    $region7: #{actor_forward.1} parent=1 // pred_check_branch
      %26 = sbr.rel (0) target = $region9
    $region8: #{actor_forward.1} parent=1 // pred_region
      _
    $region9: #{actor_forward.1} parent=1 // pred_fallthru
      _
    // Predicated region
    $region10: #{actor_forward.1} parent=1 // pred_check
      _
    $region11: #{actor_forward.1} parent=1 // pred_check_branch
      %28 = sbr.rel (0) target = $region13
    $region12: #{actor_forward.1} parent=1 // pred_region
      _
    $region13: #{actor_forward.1} parent=1 // pred_fallthru
      _
    // Predicated region
    $region14: #{actor_forward.1} parent=1 // pred_check
      _
    $region15: #{actor_forward.1} parent=1 // pred_check_branch
      %30 = sbr.rel (0) target = $region17
    $region16: #{actor_forward.1} parent=1 // pred_region
      _
    $region17: #{actor_forward.1} parent=1 // pred_fallthru
      _
    // Predicated region
    $region18: #{actor_forward.1} parent=1 // pred_check
      _
    $region19: #{actor_forward.1} parent=1 // pred_check_branch
      %32 = sbr.rel (0) target = $region21
    $region20: #{actor_forward.1} parent=1 // pred_region
      _
    $region21: #{actor_forward.1} parent=1 // pred_fallthru
      _
    // Predicated region
    $region22: #{actor_forward.1} parent=1 // pred_check
      _
    $region23: #{actor_forward.1} parent=1 // pred_check_branch
      %34 = sbr.rel (0) target = $region25
    $region24: #{actor_forward.1} parent=1 // pred_region
      _
    $region25: #{actor_forward.1} parent=1 // pred_fallthru
      _
    // Predicated region
    $region26: #{actor_forward.1} parent=1 // pred_check
      _
    $region27: #{actor_forward.1} parent=1 // pred_check_branch
      %36 = sbr.rel (0) target = $region29
    $region28: #{actor_forward.1} parent=1 // pred_region
      %s38 = ssub.s32 16, 16
      %39 = vsyncadd [#allocation6], %s38
      %s41 = sshll.u32 [#allocation5], 4
      %s42 = int_to_ptr.vmem [resolvable:$true] %s41
      %44 = dma.hbm_to_vmem [thread:$0]  %s6, 16, %s42, [#allocation6]
    $region29: #{actor_forward.1} parent=1 // pred_fallthru
      _
    // Predicated region
    $region30: #{actor_forward.1} parent=1 // pred_check
      _
    $region31: #{actor_forward.1} parent=1 // pred_check_branch
      %46 = sbr.rel (0) target = $region33
    $region32: #{actor_forward.1} parent=1 // pred_region
      %47 = dma.done [#allocation3], 128
    $region33: #{actor_forward.1} parent=1 // pred_fallthru
      _
    // Predicated region
    $region34: #{actor_forward.1} parent=1 // pred_check
      _
    $region35: #{actor_forward.1} parent=1 // pred_check_branch
      %49 = sbr.rel (0) target = $region37
    $region36: #{actor_forward.1} parent=1 // pred_region
      %50 = dma.done [#allocation6], 16
    $region37: #{actor_forward.1} parent=1 // pred_fallthru
      _
    %v51 = vld [vmem:[#allocation2] sm:$0xff]
    %v52 = vld [vmem:[%s1] sm:$0xff]
    %v53 = vld [vmem:[%s1 + $0x8] sm:$0xff]
    %v54 = vld [vmem:[%s2] sm:$0x1]
    %v56 = vlaneseq
    %v57 = vshrl.u32 %v56, 7
    %v58 = vsub.s32 0, %v57
    %v59 = vrot.slane %v54, %v58
    %vm61 = vcmask 130048
    %v63 = vsel %vm61, %v51, 0
    %65 = vmatprep.subr.mxu0 0.0
    %66 = vmatpush1.msra.mxu0 %v52
    %67 = vmatprep.subr.mxu0 0.0
    %68 = vmatpush1.msra.mxu0 %v53
    %69 = vmatprep.subr.mxu0 0.0
    %70 = vmatpush1.msra.mxu0 0.0
    %71 = vmatprep.subr.mxu0 0.0
    %72 = vmatpush1.msra.mxu0 0.0
    %73 = vmatprep.subr.mxu0 0.0
    %74 = vmatpush1.msra.mxu0 0.0
    %75 = vmatprep.subr.mxu0 0.0
    %76 = vmatpush1.msra.mxu0 0.0
    %77 = vmatprep.subr.mxu0 0.0
    %78 = vmatpush1.msra.mxu0 0.0
    %79 = vmatprep.subr.mxu0 0.0
    %80 = vmatpush1.msra.mxu0 0.0
    %81 = vmatprep.subr.mxu0 0.0
    %82 = vmatpush1.msra.mxu0 0.0
    %83 = vmatprep.subr.mxu0 0.0
    %84 = vmatpush1.msra.mxu0 0.0
    %85 = vmatprep.subr.mxu0 0.0
    %86 = vmatpush1.msra.mxu0 0.0
    %87 = vmatprep.subr.mxu0 0.0
    %88 = vmatpush1.msra.mxu0 0.0
    %89 = vmatprep.subr.mxu0 0.0
    %90 = vmatpush1.msra.mxu0 0.0
    %91 = vmatprep.subr.mxu0 0.0
    %92 = vmatpush1.msra.mxu0 0.0
    %93 = vmatprep.subr.mxu0 0.0
    %94 = vmatpush1.msra.mxu0 0.0
    %95 = vmatprep.subr.mxu0 0.0
    %96 = vmatpush1.msra.mxu0 0.0
    %97 = vmatprep.subr.mxu0 0.0
    %98 = vmatpush1.msra.mxu0 0.0
    %99 = vmatprep.subr.mxu0 0.0
    %100 = vmatpush1.msra.mxu0 0.0
    %101 = vmatprep.subr.mxu0 0.0
    %102 = vmatpush1.msra.mxu0 0.0
    %103 = vmatprep.subr.mxu0 0.0
    %104 = vmatpush1.msra.mxu0 0.0
    %105 = vmatprep.subr.mxu0 0.0
    %106 = vmatpush1.msra.mxu0 0.0
    %107 = vmatprep.subr.mxu0 0.0
    %108 = vmatpush1.msra.mxu0 0.0
    %109 = vmatprep.subr.mxu0 0.0
    %110 = vmatpush1.msra.mxu0 0.0
    %111 = vmatprep.subr.mxu0 0.0
    %112 = vmatpush1.msra.mxu0 0.0
    %113 = vmatprep.subr.mxu0 0.0
    %114 = vmatpush1.msra.mxu0 0.0
    %115 = vmatprep.subr.mxu0 0.0
    %116 = vmatpush1.msra.mxu0 0.0
    %117 = vmatprep.subr.mxu0 0.0
    %118 = vmatpush1.msra.mxu0 0.0
    %119 = vmatprep.subr.mxu0 0.0
    %120 = vmatpush1.msra.mxu0 0.0
    %121 = vmatprep.subr.mxu0 0.0
    %122 = vmatpush1.msra.mxu0 0.0
    %123 = vmatprep.subr.mxu0 0.0
    %124 = vmatpush1.msra.mxu0 0.0
    %125 = vmatprep.subr.mxu0 0.0
    %126 = vmatpush1.msra.mxu0 0.0
    %127 = vmatprep.subr.mxu0 0.0
    %128 = vmatpush1.msra.mxu0 0.0
    %129 = vmatprep.mubr.f32.mxu0 0.0
    %130 = vmatmul.mubr.f32.gmra.mrb[0].mxu0 %v63
    %v131 = vpop.f32.mrb[0].mxu0
    %v132 = vadd.f32 %v59, %v131
    %v133 = vpop.f32.mrb[0].mxu0
    %134 = vdwg.mxu0
    %v135 = vmax.f32 %v132, 0.0
    %v136 = vld [vmem:[%s3] sm:$0xff]
    %v137 = vld [vmem:[%s3 + $0x8] sm:$0xff]
    %v138 = vld [vmem:[%s3 + $0x10] sm:$0xff]
    %v139 = vld [vmem:[%s3 + $0x18] sm:$0xff]
    %v140 = vld [vmem:[%s4] sm:$0x1]
    %v142 = vlaneseq
    %v143 = vshrl.u32 %v142, 7
    %v144 = vsub.s32 0, %v143
    %v145 = vrot.slane %v140, %v144
    %vm147 = vcmask 261120
    %v149 = vsel %vm147, %v135, 0
    %151 = vmatprep.subr.mxu0 0.0
    %152 = vmatpush1.msra.mxu0 %v136
    %153 = vmatprep.subr.mxu0 0.0
    %154 = vmatpush1.msra.mxu0 %v137
    %155 = vmatprep.subr.mxu0 0.0
    %156 = vmatpush1.msra.mxu0 %v138
    %157 = vmatprep.subr.mxu0 0.0
    %158 = vmatpush1.msra.mxu0 %v139
    %159 = vmatprep.subr.mxu0 0.0
    %160 = vmatpush1.msra.mxu0 0.0
    %161 = vmatprep.subr.mxu0 0.0
    %162 = vmatpush1.msra.mxu0 0.0
    %163 = vmatprep.subr.mxu0 0.0
    %164 = vmatpush1.msra.mxu0 0.0
    %165 = vmatprep.subr.mxu0 0.0
    %166 = vmatpush1.msra.mxu0 0.0
    %167 = vmatprep.subr.mxu0 0.0
    %168 = vmatpush1.msra.mxu0 0.0
    %169 = vmatprep.subr.mxu0 0.0
    %170 = vmatpush1.msra.mxu0 0.0
    %171 = vmatprep.subr.mxu0 0.0
    %172 = vmatpush1.msra.mxu0 0.0
    %173 = vmatprep.subr.mxu0 0.0
    %174 = vmatpush1.msra.mxu0 0.0
    %175 = vmatprep.subr.mxu0 0.0
    %176 = vmatpush1.msra.mxu0 0.0
    %177 = vmatprep.subr.mxu0 0.0
    %178 = vmatpush1.msra.mxu0 0.0
    %179 = vmatprep.subr.mxu0 0.0
    %180 = vmatpush1.msra.mxu0 0.0
    %181 = vmatprep.subr.mxu0 0.0
    %182 = vmatpush1.msra.mxu0 0.0
    %183 = vmatprep.subr.mxu0 0.0
    %184 = vmatpush1.msra.mxu0 0.0
    %185 = vmatprep.subr.mxu0 0.0
    %186 = vmatpush1.msra.mxu0 0.0
    %187 = vmatprep.subr.mxu0 0.0
    %188 = vmatpush1.msra.mxu0 0.0
    %189 = vmatprep.subr.mxu0 0.0
    %190 = vmatpush1.msra.mxu0 0.0
    %191 = vmatprep.subr.mxu0 0.0
    %192 = vmatpush1.msra.mxu0 0.0
    %193 = vmatprep.subr.mxu0 0.0
    %194 = vmatpush1.msra.mxu0 0.0
    %195 = vmatprep.subr.mxu0 0.0
    %196 = vmatpush1.msra.mxu0 0.0
    %197 = vmatprep.subr.mxu0 0.0
    %198 = vmatpush1.msra.mxu0 0.0
    %199 = vmatprep.subr.mxu0 0.0
    %200 = vmatpush1.msra.mxu0 0.0
    %201 = vmatprep.subr.mxu0 0.0
    %202 = vmatpush1.msra.mxu0 0.0
    %203 = vmatprep.subr.mxu0 0.0
    %204 = vmatpush1.msra.mxu0 0.0
    %205 = vmatprep.subr.mxu0 0.0
    %206 = vmatpush1.msra.mxu0 0.0
    %207 = vmatprep.subr.mxu0 0.0
    %208 = vmatpush1.msra.mxu0 0.0
    %209 = vmatprep.subr.mxu0 0.0
    %210 = vmatpush1.msra.mxu0 0.0
    %211 = vmatprep.subr.mxu0 0.0
    %212 = vmatpush1.msra.mxu0 0.0
    %213 = vmatprep.subr.mxu0 0.0
    %214 = vmatpush1.msra.mxu0 0.0
    %215 = vmatprep.mubr.f32.mxu0 0.0
    %216 = vmatmul.mubr.f32.gmra.mrb[0].mxu0 %v149
    %v217 = vpop.f32.mrb[0].mxu0
    %v218 = vadd.f32 %v145, %v217
    %v219 = vpop.f32.mrb[0].mxu0
    %220 = vdwg.mxu0
    %v221 = vmax.f32 %v218, 0.0
    %v222 = vld [vmem:[%s5] sm:$0xff]
    %v223 = vld [vmem:[%s5 + $0x8] sm:$0xff]
    %v224 = vld [vmem:[%s5 + $0x10] sm:$0xff]
    %v225 = vld [vmem:[%s5 + $0x18] sm:$0xff]
    %v226 = vld [vmem:[#allocation5] sm:$0x1]
    %v228 = vlaneseq
    %v229 = vshrl.u32 %v228, 7
    %v230 = vsub.s32 0, %v229
    %v231 = vrot.slane %v226, %v230
    %v234 = vsel %vm147, %v221, 0
    %236 = vmatprep.subr.mxu0 0.0
    %237 = vmatpush1.msra.mxu0 %v222
    %238 = vmatprep.subr.mxu0 0.0
    %239 = vmatpush1.msra.mxu0 %v223
    %240 = vmatprep.subr.mxu0 0.0
    %241 = vmatpush1.msra.mxu0 %v224
    %242 = vmatprep.subr.mxu0 0.0
    %243 = vmatpush1.msra.mxu0 %v225
    %244 = vmatprep.subr.mxu0 0.0
    %245 = vmatpush1.msra.mxu0 0.0
    %246 = vmatprep.subr.mxu0 0.0
    %247 = vmatpush1.msra.mxu0 0.0
    %248 = vmatprep.subr.mxu0 0.0
    %249 = vmatpush1.msra.mxu0 0.0
    %250 = vmatprep.subr.mxu0 0.0
    %251 = vmatpush1.msra.mxu0 0.0
    %252 = vmatprep.subr.mxu0 0.0
    %253 = vmatpush1.msra.mxu0 0.0
    %254 = vmatprep.subr.mxu0 0.0
    %255 = vmatpush1.msra.mxu0 0.0
    %256 = vmatprep.subr.mxu0 0.0
    %257 = vmatpush1.msra.mxu0 0.0
    %258 = vmatprep.subr.mxu0 0.0
    %259 = vmatpush1.msra.mxu0 0.0
    %260 = vmatprep.subr.mxu0 0.0
    %261 = vmatpush1.msra.mxu0 0.0
    %262 = vmatprep.subr.mxu0 0.0
    %263 = vmatpush1.msra.mxu0 0.0
    %264 = vmatprep.subr.mxu0 0.0
    %265 = vmatpush1.msra.mxu0 0.0
    %266 = vmatprep.subr.mxu0 0.0
    %267 = vmatpush1.msra.mxu0 0.0
    %268 = vmatprep.subr.mxu0 0.0
    %269 = vmatpush1.msra.mxu0 0.0
    %270 = vmatprep.subr.mxu0 0.0
    %271 = vmatpush1.msra.mxu0 0.0
    %272 = vmatprep.subr.mxu0 0.0
    %273 = vmatpush1.msra.mxu0 0.0
    %274 = vmatprep.subr.mxu0 0.0
    %275 = vmatpush1.msra.mxu0 0.0
    %276 = vmatprep.subr.mxu0 0.0
    %277 = vmatpush1.msra.mxu0 0.0
    %278 = vmatprep.subr.mxu0 0.0
    %279 = vmatpush1.msra.mxu0 0.0
    %280 = vmatprep.subr.mxu0 0.0
    %281 = vmatpush1.msra.mxu0 0.0
    %282 = vmatprep.subr.mxu0 0.0
    %283 = vmatpush1.msra.mxu0 0.0
    %284 = vmatprep.subr.mxu0 0.0
    %285 = vmatpush1.msra.mxu0 0.0
    %286 = vmatprep.subr.mxu0 0.0
    %287 = vmatpush1.msra.mxu0 0.0
    %288 = vmatprep.subr.mxu0 0.0
    %289 = vmatpush1.msra.mxu0 0.0
    %290 = vmatprep.subr.mxu0 0.0
    %291 = vmatpush1.msra.mxu0 0.0
    %292 = vmatprep.subr.mxu0 0.0
    %293 = vmatpush1.msra.mxu0 0.0
    %294 = vmatprep.subr.mxu0 0.0
    %295 = vmatpush1.msra.mxu0 0.0
    %296 = vmatprep.subr.mxu0 0.0
    %297 = vmatpush1.msra.mxu0 0.0
    %298 = vmatprep.subr.mxu0 0.0
    %299 = vmatpush1.msra.mxu0 0.0
    %300 = vmatprep.mubr.f32.mxu0 0.0
    %301 = vmatmul.mubr.f32.gmra.mrb[0].mxu0 %v234
    %v302 = vpop.f32.mrb[0].mxu0
    %v303 = vadd.f32 %v231, %v302
    %v304 = vpop.f32.mrb[0].mxu0
    %305 = vdwg.mxu0
    %v306 = vtanh.pop %v303
    %vm307 = vcmask 64512
    %308 = vst.msk [vmem:[#allocation7] sm:$0xff] %vm307, %v306
    // Predicated region
    $region38: #{actor_forward.1} parent=1 // pred_check
      _
    $region39: #{actor_forward.1} parent=1 // pred_check_branch
      %310 = sbr.rel (0) target = $region41
    $region40: #{actor_forward.1} parent=1 // pred_region
      %s312 = ssub.s32 128, 128
      %313 = vsyncadd [#allocation4], %s312
      %s315 = sshll.u32 [#allocation7], 4
      %s316 = int_to_ptr.vmem [resolvable:$true] %s315
      %318 = dma.vmem_to_hbm [thread:$0]  %s316, 128, %s7, [#allocation4]
    $region41: #{actor_forward.1} parent=1 // pred_fallthru
      _
    // Predicated region
    $region42: #{actor_forward.1} parent=1 // pred_check
      _
    $region43: #{actor_forward.1} parent=1 // pred_check_branch
      %320 = sbr.rel (0) target = $region45
    $region44: #{actor_forward.1} parent=1 // pred_region
      %321 = dma.done [#allocation4], 128
    $region45: #{actor_forward.1} parent=1 // pred_fallthru
      _
    %322 = vsyncpa [#allocation3], 1
    %323 = vsyncpa [#allocation6], 1
    %324 = vsyncpa [#allocation4], 1

</llo_original>
